<compile_context>
chip_gen: v7x
topology: tpu7x:2x2x1
jax: 0.10.0
libtpu: 0.0.40
codegen_flags: <defaults>
</compile_context>

<pallas_src>
import jax
import jax.numpy as jnp
from jax.experimental import pallas as pl
from jax.experimental.pallas import tpu as pltpu

# ---- StarNet hyperparameters (mirror StarNet.__init__) ----
NUM_FILTERS = (4, 16)
FILTER_LEN = 8
POOL_LEN = 4
NUM_HIDDEN = (256, 128)

# star_dataset.spectra_mean / spectra_std are plain scalars in StarNet.
SPECTRA_MEAN = 0.5
SPECTRA_STD = 0.25

# Conv stage tiling
TARGET_LANES = 4096     # lanes packed per conv grid step (samples side-by-side)
CW_MAX = 256            # time-chunk width (pooled columns per in-kernel chunk)

# MLP tiling
TK_MAX = 2048           # fc1 contraction tile


def _round_up(a, b):
    return (a + b - 1) // b * b


# ---------------- Pallas kernels ----------------

def _make_conv_pool_kernel(nd, np_, c2, cw, nchunk):
    """Polyphase conv1+ReLU -> conv2+ReLU -> MaxPool1d(4,4), time-chunked.

    Block shapes seen by the kernel:
      x_ref:  (nchunk, np_, cw + 2*(nd-1))  bf16  halo'd phase-split chunks
      w1_ref: (nd, np_*C1, np_)             bf16  polyphase conv1 weights (norm folded in)
      b1_ref: (np_*C1, 1)                   f32
      w2_ref: (nd, np_*c2, np_*C1)          bf16  polyphase conv2 weights
      b2_ref: (c2, 1)                       f32
      out_ref:(nchunk, c2, cw)              bf16  pooled activations, lane-dense tiles
    """
    cw2 = cw + 2

    def kernel(x_ref, w1_ref, b1_ref, w2_ref, b2_ref, out_ref):
        # hoist tiny weight / bias loads out of the chunk loop
        w1 = [w1_ref[d] for d in range(nd)]
        w2 = [w2_ref[d] for d in range(nd)]
        b1 = b1_ref[...]
        b2 = b2_ref[...]

        def chunk(t):
            xs = x_ref[t]                                   # (np_, cw+4) bf16
            # conv1 (+ folded normalization): nd dense matmuls, f32 accumulation
            a1 = jnp.dot(w1[0], xs[:, 0:cw2],
                         preferred_element_type=jnp.float32)
            for d in range(1, nd):
                a1 = a1 + jnp.dot(w1[d], xs[:, d:d + cw2],
                                  preferred_element_type=jnp.float32)
            h1 = jnp.maximum(a1 + b1, 0.0).astype(jnp.bfloat16)    # (16, cw+2)

            # conv2: rows of a2 are (pool residue r, out channel o)
            a2 = jnp.dot(w2[0], h1[:, 0:cw],
                         preferred_element_type=jnp.float32)
            for d in range(1, nd):
                a2 = a2 + jnp.dot(w2[d], h1[:, d:d + cw],
                                  preferred_element_type=jnp.float32)

            # MaxPool1d(4,4): elementwise max over the 4 residue row-blocks
            m = a2[0:c2, :]
            for r in range(1, np_):
                m = jnp.maximum(m, a2[r * c2:(r + 1) * c2, :])
            out_ref[t] = jnp.maximum(m + b2, 0.0).astype(out_ref.dtype)

        if nchunk <= 2:
            # short / single chunk: straight-line, fully static indexing
            for t in range(nchunk):
                chunk(t)
        else:
            # bounded live ranges per chunk; only leading-dim dynamic indexing
            def body(t, carry):
                chunk(t)
                return carry
            jax.lax.fori_loop(0, nchunk, body, 0)

    return kernel


def mlp_kernel(x_ref, w1_ref, b1_ref, w2_ref, b2_ref, w3_ref, b3_ref, o_ref, acc_ref):
    """fc1 (K-tiled, f32 accumulation) -> ReLU -> fc2 -> ReLU -> output, fused."""
    k = pl.program_id(1)

    @pl.when(k == 0)
    def _():
        acc_ref[...] = jnp.zeros_like(acc_ref)

    acc_ref[...] += jnp.dot(x_ref[...], w1_ref[...],
                            preferred_element_type=jnp.float32)

    @pl.when(k == pl.num_programs(1) - 1)
    def _():
        h1 = jnp.maximum(acc_ref[...] + b1_ref[...], 0.0).astype(w2_ref.dtype)
        h2 = jnp.maximum(
            jnp.dot(h1, w2_ref[...], preferred_element_type=jnp.float32) + b2_ref[...],
            0.0).astype(w3_ref.dtype)
        o_ref[...] = (jnp.dot(h2, w3_ref[...], preferred_element_type=jnp.float32)
                      + b3_ref[...]).astype(o_ref.dtype)


# ---------------- Wrapper helpers ----------------

def _polyphase_conv_weights(w1, b1, w2):
    """Phase-offset weight blocks so conv1/conv2/pool use only contiguous slices.

    Phase m, offset d:   W1_d[C1*m + c, p]           = w1[c, 4d + p - m]   (0 if OOR)
    Residue r, offset d: W2_d[C2*r + o, C1*p + c]    = w2[o, c, 4d + p - r] (0 if OOR)
    """
    C1, K = w1.shape
    C2 = w2.shape[0]
    NP = POOL_LEN
    ND = ((NP - 1) + (K - 1)) // NP + 1      # number of phase-column offsets (=3)

    w1_blocks, w2_blocks = [], []
    for d in range(ND):
        w1d = jnp.zeros((NP * C1, NP), jnp.float32)
        for m in range(NP):
            for p in range(NP):
                k = NP * d + p - m
                if 0 <= k < K:
                    w1d = w1d.at[C1 * m:C1 * (m + 1), p].set(w1[:, k])
        w1_blocks.append(w1d)

        w2d = jnp.zeros((NP * C2, NP * C1), jnp.float32)
        for r in range(NP):
            for p in range(NP):
                k = NP * d + p - r
                if 0 <= k < K:
                    w2d = w2d.at[C2 * r:C2 * (r + 1), C1 * p:C1 * (p + 1)].set(w2[:, :, k])
        w2_blocks.append(w2d)

    w1s = jnp.stack(w1_blocks)               # (ND, NP*C1, NP)
    w2s = jnp.stack(w2_blocks)               # (ND, NP*C2, NP*C1)
    b1t = jnp.tile(b1, NP).reshape(NP * C1, 1)
    return w1s, b1t, w2s, ND


def starnet_forward(x, params, norm_in=True, denorm_out=False):
    """x: (B, P) float32 spectra -> (B, num_labels)."""
    B, P = x.shape
    C1, C2 = NUM_FILTERS
    K = FILTER_LEN
    NP = POOL_LEN
    L1 = P - K + 1
    L2 = L1 - K + 1
    LP = L2 // NP
    H1, H2 = NUM_HIDDEN
    NL = params["out_w"].shape[0]

    cdt = jnp.bfloat16      # conv MXU operands / pooled output (f32 accumulation in-kernel)
    wdt = jnp.bfloat16      # MLP MXU operands (f32 accumulation / biases)

    # ---- conv weights: fold the scalar input normalization into conv1 ----
    w1 = params["conv1_w"][:, 0, :].astype(jnp.float32)          # (C1, K)
    b1 = params["conv1_b"].astype(jnp.float32)
    if norm_in:
        b1 = b1 - (SPECTRA_MEAN / SPECTRA_STD) * w1.sum(axis=1)
        w1 = w1 / SPECTRA_STD
    w1s, b1t, w2s, ND = _polyphase_conv_weights(
        w1, b1, params["conv2_w"].astype(jnp.float32))
    b2 = params["conv2_b"].reshape(C2, 1).astype(jnp.float32)
    w1s = w1s.astype(cdt)
    w2s = w2s.astype(cdt)

    # ---- layout: phase split, pack BB samples per grid step, halo'd time chunks ----
    HALO = 2 * (ND - 1)                      # = 4 extra phase columns per window
    Q = LP + HALO                            # phase columns carried per sample
    BB = max(1, min(128, TARGET_LANES // Q, B))   # samples packed per grid step
    Bc = _round_up(B, BB)
    G = Bc // BB
    WB = BB * Q                              # meaningful packed lane columns per step
    CW = max(128, min(CW_MAX, _round_up(WB, 128)))   # pooled columns per chunk
    NCHUNK = -(-WB // CW)
    WOUT = NCHUNK * CW
    CWIN = CW + HALO

    ncopy = min(P, NP * Q)
    xa = jnp.pad(x[:, :ncopy].astype(cdt), ((0, Bc - B), (0, NP * Q - ncopy)))
    # single reshape/transpose: (Bc, NP*Q) -> (G, NP, WB); xgp[g, p, s*Q+i] = x[g*BB+s, NP*i+p]
    xgp = xa.reshape(G, BB, Q, NP).transpose(0, 3, 1, 2).reshape(G, NP, WB)
    xgp = jnp.pad(xgp, ((0, 0), (0, 0), (0, WOUT + HALO - WB)))
    # halo'd chunk windows on a leading dim (chunk t holds packed columns [t*CW, t*CW+CW+4))
    col = jnp.arange(NCHUNK)[:, None] * CW + jnp.arange(CWIN)[None, :]
    xck = (jnp.take(xgp, col, axis=2)                 # (G, NP, NCHUNK, CWIN)
           .transpose(0, 2, 1, 3)
           .reshape(G * NCHUNK, NP, CWIN))

    conv_kernel = _make_conv_pool_kernel(ND, NP, C2, CW, NCHUNK)
    slab = pl.pallas_call(
        conv_kernel,
        out_shape=jax.ShapeDtypeStruct((G * NCHUNK, C2, CW), cdt),
        grid_spec=pltpu.PrefetchScalarGridSpec(
            num_scalar_prefetch=0,
            grid=(G,),
            in_specs=[
                pl.BlockSpec((NCHUNK, NP, CWIN), lambda g: (g, 0, 0)),
                pl.BlockSpec((ND, NP * C1, NP), lambda g: (0, 0, 0)),
                pl.BlockSpec((NP * C1, 1), lambda g: (0, 0)),
                pl.BlockSpec((ND, NP * C2, NP * C1), lambda g: (0, 0, 0)),
                pl.BlockSpec((C2, 1), lambda g: (0, 0)),
            ],
            out_specs=pl.BlockSpec((NCHUNK, C2, CW), lambda g: (g, 0, 0)),
        ),
        compiler_params=pltpu.CompilerParams(
            dimension_semantics=("parallel",),
            vmem_limit_bytes=8 * 1024 * 1024),
    )(xck, w1s, b1t, w2s, b2)

    # per-sample de-interleave + torch.flatten(x, 1) layout (plain XLA glue, bf16)
    slab = slab.reshape(G, NCHUNK, C2, CW).transpose(0, 2, 1, 3).reshape(G, C2, WOUT)
    flat = (slab[:, :, :WB].reshape(G, C2, BB, Q)[..., :LP]     # (G, C2, BB, LP)
            .transpose(0, 2, 1, 3).reshape(Bc, C2 * LP))        # (Bc, C2*LP) channel-major

    # ---- fully connected stage: K-tiled fc1 with f32 accum, fc2 + output fused ----
    Kdim = C2 * LP
    TK = min(TK_MAX, _round_up(Kdim, 128))
    Kp = _round_up(Kdim, TK)
    BM = 256 if B >= 512 else 128            # 256 fills the v6e/v7x MXU M dim; v5e keeps 128-equivalent work
    Bm = _round_up(B, BM)
    NLp = _round_up(NL, 128)

    flat_p = jnp.zeros((Bm, Kp), wdt).at[:B, :Kdim].set(flat[:B])
    fc1_w = jnp.zeros((Kp, H1), wdt).at[:Kdim, :].set(params["fc1_w"].T.astype(wdt))
    fc1_b = params["fc1_b"].reshape(1, H1).astype(jnp.float32)
    fc2_w = params["fc2_w"].T.astype(wdt)                        # (H1, H2)
    fc2_b = params["fc2_b"].reshape(1, H2).astype(jnp.float32)
    out_w = jnp.zeros((H2, NLp), wdt).at[:, :NL].set(params["out_w"].T.astype(wdt))
    out_b = jnp.zeros((1, NLp), jnp.float32).at[0, :NL].set(
        params["out_b"].astype(jnp.float32))

    y = pl.pallas_call(
        mlp_kernel,
        out_shape=jax.ShapeDtypeStruct((Bm, NLp), jnp.float32),
        grid_spec=pltpu.PrefetchScalarGridSpec(
            num_scalar_prefetch=0,
            grid=(Bm // BM, Kp // TK),
            in_specs=[
                pl.BlockSpec((BM, TK), lambda m, k: (m, k)),
                pl.BlockSpec((TK, H1), lambda m, k: (k, 0)),
                pl.BlockSpec((1, H1), lambda m, k: (0, 0)),
                pl.BlockSpec((H1, H2), lambda m, k: (0, 0)),
                pl.BlockSpec((1, H2), lambda m, k: (0, 0)),
                pl.BlockSpec((H2, NLp), lambda m, k: (0, 0)),
                pl.BlockSpec((1, NLp), lambda m, k: (0, 0)),
            ],
            out_specs=pl.BlockSpec((BM, NLp), lambda m, k: (m, 0)),
            scratch_shapes=[pltpu.VMEM((BM, H1), jnp.float32)],
        ),
        compiler_params=pltpu.CompilerParams(
            dimension_semantics=("parallel", "arbitrary"),
            vmem_limit_bytes=16 * 1024 * 1024),   # working set < 5 MiB; fits v7x 64 MiB easily
    )(flat_p, fc1_w, fc1_b, fc2_w, fc2_b, out_w, out_b)

    y = y[:B, :NL]
    if denorm_out:
        # tiny (B, num_labels) elementwise rescale; default False, kept as JAX glue
        y = y * params["labels_std"] + params["labels_mean"]
    return y


# ---------------- Deterministic parameter init ----------------

def init_params(key, num_pixels, num_labels):
    C1, C2 = NUM_FILTERS
    K = FILTER_LEN
    L1 = num_pixels - K + 1
    L2 = L1 - K + 1
    LP = L2 // POOL_LEN
    flat_dim = C2 * LP
    H1, H2 = NUM_HIDDEN
    ks = jax.random.split(key, 10)

    def w(k, shape, scale=0.05):
        return (scale * jax.random.normal(k, shape)).astype(jnp.float32)

    return dict(
        conv1_w=w(ks[0], (C1, 1, K)),        # PyTorch Conv1d weight layout (out, in, k)
        conv1_b=w(ks[1], (C1,)),
        conv2_w=w(ks[2], (C2, C1, K)),
        conv2_b=w(ks[3], (C2,)),
        fc1_w=w(ks[4], (H1, flat_dim)),      # PyTorch Linear weight layout (out, in)
        fc1_b=w(ks[5], (H1,)),
        fc2_w=w(ks[6], (H2, H1)),
        fc2_b=w(ks[7], (H2,)),
        out_w=w(ks[8], (num_labels, H2)),
        out_b=w(ks[9], (num_labels,)),
        labels_mean=jnp.zeros((num_labels,), jnp.float32),
        labels_std=jnp.ones((num_labels,), jnp.float32),
    )


# ---------------- Pure-JAX reference (for correctness check) ----------------

def reference_forward(x, params, norm_in=True, denorm_out=False):
    h = (x - SPECTRA_MEAN) / SPECTRA_STD if norm_in else x
    h = h[:, None, :]
    h = jax.lax.conv_general_dilated(h, params["conv1_w"], (1,), "VALID",
                                     dimension_numbers=("NCH", "OIH", "NCH"))
    h = jax.nn.relu(h + params["conv1_b"][None, :, None])
    h = jax.lax.conv_general_dilated(h, params["conv2_w"], (1,), "VALID",
                                     dimension_numbers=("NCH", "OIH", "NCH"))
    h = jax.nn.relu(h + params["conv2_b"][None, :, None])
    B, C2, L2 = h.shape
    LP = L2 // POOL_LEN
    h = h[:, :, :LP * POOL_LEN].reshape(B, C2, LP, POOL_LEN).max(axis=-1)
    h = h.reshape(B, C2 * LP)
    h = jax.nn.relu(h @ params["fc1_w"].T + params["fc1_b"])
    h = jax.nn.relu(h @ params["fc2_w"].T + params["fc2_b"])
    y = h @ params["out_w"].T + params["out_b"]
    if denorm_out:
        y = y * params["labels_std"] + params["labels_mean"]
    return y


def _run_case(name, key, B, P, NL):
    kx, kp = jax.random.split(key)
    x = (0.3 * jax.random.normal(kx, (B, P)) + 0.6).astype(jnp.float32)
    params = init_params(kp, P, NL)
    y = jax.block_until_ready(starnet_forward(x, params))
    assert y.shape == (B, NL)
    y_ref = reference_forward(x, params)
    if not jnp.allclose(y, y_ref, rtol=3e-2, atol=3e-2):
        raise AssertionError(f"[{name}] Pallas output mismatch:\n{y}\nvs ref\n{y_ref}")


if __name__ == "__main__":
    key = jax.random.PRNGKey(0)
    k1, k2 = jax.random.split(key)

    # case 1: tiny smoke test (single time chunk, static conv path)
    _run_case("small", k1, B=2, P=128, NL=3)

    # case 2: exercises multi-sample lane packing + the chunked (fori_loop) conv path
    _run_case("chunked", k2, B=12, P=220, NL=3)

    print("KERNEL_OK")
</pallas_src>

<mosaic_0001>
module attributes {stable_mosaic.version = 11 : i64} {
  func.func @kernel(%arg0: i32, %arg1: memref<1x4x132xbf16, #tpu.memory_space<vmem>>, %arg2: memref<3x16x4xbf16, #tpu.memory_space<vmem>>, %arg3: memref<16x1xf32, #tpu.memory_space<vmem>>, %arg4: memref<3x64x16xbf16, #tpu.memory_space<vmem>>, %arg5: memref<16x1xf32, #tpu.memory_space<vmem>>, %arg6: memref<1x16x128xbf16, #tpu.memory_space<vmem>>) attributes {dimension_semantics = [#tpu.dimension_semantics<parallel>], iteration_bounds = array<i64: 1>, scalar_prefetch = 0 : i64, scratch_operands = 0 : i64, tpu.core_type = #tpu.core_type<tc>, window_params = [{transform_indices = @transform_0, window_bounds = array<i64: 1, 4, 132>}, {pipeline_mode = #tpu.pipeline_mode<synchronous>, transform_indices = @transform_1, window_bounds = array<i64: 3, 16, 4>}, {pipeline_mode = #tpu.pipeline_mode<synchronous>, transform_indices = @transform_2, window_bounds = array<i64: 16, 1>}, {pipeline_mode = #tpu.pipeline_mode<synchronous>, transform_indices = @transform_3, window_bounds = array<i64: 3, 64, 16>}, {pipeline_mode = #tpu.pipeline_mode<synchronous>, transform_indices = @transform_4, window_bounds = array<i64: 16, 1>}, {transform_indices = @transform_5, window_bounds = array<i64: 1, 16, 128>}]} {
    %c0 = arith.constant 0 : index
    %c0_0 = arith.constant 0 : index
    %c0_1 = arith.constant 0 : index
    %0 = vector.load %arg2[%c0, %c0_0, %c0_1] : memref<3x16x4xbf16, #tpu.memory_space<vmem>>, vector<1x16x4xbf16>
    %1 = vector.shape_cast %0 : vector<1x16x4xbf16> to vector<16x4xbf16>
    %c1 = arith.constant 1 : index
    %c0_2 = arith.constant 0 : index
    %c0_3 = arith.constant 0 : index
    %2 = vector.load %arg2[%c1, %c0_2, %c0_3] : memref<3x16x4xbf16, #tpu.memory_space<vmem>>, vector<1x16x4xbf16>
    %3 = vector.shape_cast %2 : vector<1x16x4xbf16> to vector<16x4xbf16>
    %c2 = arith.constant 2 : index
    %c0_4 = arith.constant 0 : index
    %c0_5 = arith.constant 0 : index
    %4 = vector.load %arg2[%c2, %c0_4, %c0_5] : memref<3x16x4xbf16, #tpu.memory_space<vmem>>, vector<1x16x4xbf16>
    %5 = vector.shape_cast %4 : vector<1x16x4xbf16> to vector<16x4xbf16>
    %c0_6 = arith.constant 0 : index
    %c0_7 = arith.constant 0 : index
    %c0_8 = arith.constant 0 : index
    %6 = vector.load %arg4[%c0_6, %c0_7, %c0_8] : memref<3x64x16xbf16, #tpu.memory_space<vmem>>, vector<1x64x16xbf16>
    %7 = vector.shape_cast %6 : vector<1x64x16xbf16> to vector<64x16xbf16>
    %c1_9 = arith.constant 1 : index
    %c0_10 = arith.constant 0 : index
    %c0_11 = arith.constant 0 : index
    %8 = vector.load %arg4[%c1_9, %c0_10, %c0_11] : memref<3x64x16xbf16, #tpu.memory_space<vmem>>, vector<1x64x16xbf16>
    %9 = vector.shape_cast %8 : vector<1x64x16xbf16> to vector<64x16xbf16>
    %c2_12 = arith.constant 2 : index
    %c0_13 = arith.constant 0 : index
    %c0_14 = arith.constant 0 : index
    %10 = vector.load %arg4[%c2_12, %c0_13, %c0_14] : memref<3x64x16xbf16, #tpu.memory_space<vmem>>, vector<1x64x16xbf16>
    %11 = vector.shape_cast %10 : vector<1x64x16xbf16> to vector<64x16xbf16>
    %c0_15 = arith.constant 0 : index
    %c0_16 = arith.constant 0 : index
    %12 = vector.load %arg3[%c0_15, %c0_16] : memref<16x1xf32, #tpu.memory_space<vmem>>, vector<16x1xf32>
    %c0_17 = arith.constant 0 : index
    %c0_18 = arith.constant 0 : index
    %13 = vector.load %arg5[%c0_17, %c0_18] : memref<16x1xf32, #tpu.memory_space<vmem>>, vector<16x1xf32>
    %c0_19 = arith.constant 0 : index
    %c0_20 = arith.constant 0 : index
    %c0_21 = arith.constant 0 : index
    %14 = vector.load %arg1[%c0_19, %c0_20, %c0_21] : memref<1x4x132xbf16, #tpu.memory_space<vmem>>, vector<1x4x132xbf16>
    %15 = vector.shape_cast %14 : vector<1x4x132xbf16> to vector<4x132xbf16>
    %16 = vector.extract_strided_slice %15 {offsets = [0, 0], sizes = [4, 130], strides = [1, 1]} : vector<4x132xbf16> to vector<4x130xbf16>
    %cst = arith.constant dense<0.000000e+00> : vector<16x130xf32>
    %17 = tpu.matmul %1, %16, %cst {dimension_numbers = #tpu.dot_dimension_numbers<[1], [0], [0], [1], [0, 0, 1, 1], [], []>} : vector<16x4xbf16>, vector<4x130xbf16>, vector<16x130xf32> -> vector<16x130xf32>
    %18 = vector.extract_strided_slice %15 {offsets = [0, 1], sizes = [4, 130], strides = [1, 1]} : vector<4x132xbf16> to vector<4x130xbf16>
    %cst_22 = arith.constant dense<0.000000e+00> : vector<16x130xf32>
    %19 = tpu.matmul %3, %18, %cst_22 {dimension_numbers = #tpu.dot_dimension_numbers<[1], [0], [0], [1], [0, 0, 1, 1], [], []>} : vector<16x4xbf16>, vector<4x130xbf16>, vector<16x130xf32> -> vector<16x130xf32>
    %20 = arith.addf %17, %19 : vector<16x130xf32>
    %21 = vector.extract_strided_slice %15 {offsets = [0, 2], sizes = [4, 130], strides = [1, 1]} : vector<4x132xbf16> to vector<4x130xbf16>
    %cst_23 = arith.constant dense<0.000000e+00> : vector<16x130xf32>
    %22 = tpu.matmul %5, %21, %cst_23 {dimension_numbers = #tpu.dot_dimension_numbers<[1], [0], [0], [1], [0, 0, 1, 1], [], []>} : vector<16x4xbf16>, vector<4x130xbf16>, vector<16x130xf32> -> vector<16x130xf32>
    %23 = arith.addf %20, %22 : vector<16x130xf32>
    %24 = vector.broadcast %12 : vector<16x1xf32> to vector<16x130xf32>
    %25 = arith.addf %23, %24 : vector<16x130xf32>
    %cst_24 = arith.constant 0.000000e+00 : f32
    %26 = vector.broadcast %cst_24 : f32 to vector<16x130xf32>
    %27 = arith.maximumf %25, %26 : vector<16x130xf32>
    %28 = arith.truncf %27 : vector<16x130xf32> to vector<16x130xbf16>
    %29 = vector.extract_strided_slice %28 {offsets = [0, 0], sizes = [16, 128], strides = [1, 1]} : vector<16x130xbf16> to vector<16x128xbf16>
    %cst_25 = arith.constant dense<0.000000e+00> : vector<64x128xf32>
    %30 = tpu.matmul %7, %29, %cst_25 {dimension_numbers = #tpu.dot_dimension_numbers<[1], [0], [0], [1], [0, 0, 1, 1], [], []>} : vector<64x16xbf16>, vector<16x128xbf16>, vector<64x128xf32> -> vector<64x128xf32>
    %31 = vector.extract_strided_slice %28 {offsets = [0, 1], sizes = [16, 128], strides = [1, 1]} : vector<16x130xbf16> to vector<16x128xbf16>
    %cst_26 = arith.constant dense<0.000000e+00> : vector<64x128xf32>
    %32 = tpu.matmul %9, %31, %cst_26 {dimension_numbers = #tpu.dot_dimension_numbers<[1], [0], [0], [1], [0, 0, 1, 1], [], []>} : vector<64x16xbf16>, vector<16x128xbf16>, vector<64x128xf32> -> vector<64x128xf32>
    %33 = arith.addf %30, %32 : vector<64x128xf32>
    %34 = vector.extract_strided_slice %28 {offsets = [0, 2], sizes = [16, 128], strides = [1, 1]} : vector<16x130xbf16> to vector<16x128xbf16>
    %cst_27 = arith.constant dense<0.000000e+00> : vector<64x128xf32>
    %35 = tpu.matmul %11, %34, %cst_27 {dimension_numbers = #tpu.dot_dimension_numbers<[1], [0], [0], [1], [0, 0, 1, 1], [], []>} : vector<64x16xbf16>, vector<16x128xbf16>, vector<64x128xf32> -> vector<64x128xf32>
    %36 = arith.addf %33, %35 : vector<64x128xf32>
    %37 = vector.extract_strided_slice %36 {offsets = [0, 0], sizes = [16, 128], strides = [1, 1]} : vector<64x128xf32> to vector<16x128xf32>
    %38 = vector.extract_strided_slice %36 {offsets = [16, 0], sizes = [16, 128], strides = [1, 1]} : vector<64x128xf32> to vector<16x128xf32>
    %39 = arith.maximumf %37, %38 : vector<16x128xf32>
    %40 = vector.extract_strided_slice %36 {offsets = [32, 0], sizes = [16, 128], strides = [1, 1]} : vector<64x128xf32> to vector<16x128xf32>
    %41 = arith.maximumf %39, %40 : vector<16x128xf32>
    %42 = vector.extract_strided_slice %36 {offsets = [48, 0], sizes = [16, 128], strides = [1, 1]} : vector<64x128xf32> to vector<16x128xf32>
    %43 = arith.maximumf %41, %42 : vector<16x128xf32>
    %44 = vector.broadcast %13 : vector<16x1xf32> to vector<16x128xf32>
    %45 = arith.addf %43, %44 : vector<16x128xf32>
    %cst_28 = arith.constant 0.000000e+00 : f32
    %46 = vector.broadcast %cst_28 : f32 to vector<16x128xf32>
    %47 = arith.maximumf %45, %46 : vector<16x128xf32>
    %48 = arith.truncf %47 : vector<16x128xf32> to vector<16x128xbf16>
    %c0_29 = arith.constant 0 : index
    %c0_30 = arith.constant 0 : index
    %c0_31 = arith.constant 0 : index
    %49 = vector.load %arg6[%c0_29, %c0_30, %c0_31] : memref<1x16x128xbf16, #tpu.memory_space<vmem>>, vector<1x16x128xbf16>
    %50 = vector.shape_cast %49 : vector<1x16x128xbf16> to vector<16x128xbf16>
    %51 = vector.shape_cast %48 : vector<16x128xbf16> to vector<1x16x128xbf16>
    tpu.vector_store %arg6[%c0_29, %c0_30, %c0_31], %51 {strides = array<i32>} : memref<1x16x128xbf16, #tpu.memory_space<vmem>>, vector<1x16x128xbf16>,
    return
  }
  func.func @transform_0(%arg0: i32) -> (i32, i32, i32) {
    %c0_i32 = arith.constant 0 : i32
    %c0_i32_0 = arith.constant 0 : i32
    %c0_i32_1 = arith.constant 0 : i32
    return %arg0, %c0_i32, %c0_i32_0 : i32, i32, i32
  }
  func.func @transform_1(%arg0: i32) -> (i32, i32, i32) {
    %c0_i32 = arith.constant 0 : i32
    %c0_i32_0 = arith.constant 0 : i32
    %c0_i32_1 = arith.constant 0 : i32
    %c0_i32_2 = arith.constant 0 : i32
    return %c0_i32, %c0_i32_0, %c0_i32_1 : i32, i32, i32
  }
  func.func @transform_2(%arg0: i32) -> (i32, i32) {
    %c0_i32 = arith.constant 0 : i32
    %c0_i32_0 = arith.constant 0 : i32
    %c0_i32_1 = arith.constant 0 : i32
    return %c0_i32, %c0_i32_0 : i32, i32
  }
  func.func @transform_3(%arg0: i32) -> (i32, i32, i32) {
    %c0_i32 = arith.constant 0 : i32
    %c0_i32_0 = arith.constant 0 : i32
    %c0_i32_1 = arith.constant 0 : i32
    %c0_i32_2 = arith.constant 0 : i32
    return %c0_i32, %c0_i32_0, %c0_i32_1 : i32, i32, i32
  }
  func.func @transform_4(%arg0: i32) -> (i32, i32) {
    %c0_i32 = arith.constant 0 : i32
    %c0_i32_0 = arith.constant 0 : i32
    %c0_i32_1 = arith.constant 0 : i32
    return %c0_i32, %c0_i32_0 : i32, i32
  }
  func.func @transform_5(%arg0: i32) -> (i32, i32, i32) {
    %c0_i32 = arith.constant 0 : i32
    %c0_i32_0 = arith.constant 0 : i32
    %c0_i32_1 = arith.constant 0 : i32
    return %arg0, %c0_i32, %c0_i32_0 : i32, i32, i32
  }
}

</mosaic_0001>

<llo_original>
// kernel: tpu_custom_call.1
$region0: #{tpu_custom_call.1}
  #allocation0 [shape = 'u32[]', space=smem, size = 0x4, offset = 0x4, fixed_abs, tag = 'smem constant byte address 0x4 - core index']
  #allocation1 [shape = 'u32[144,128]{1,0:T(1,128)}', space=vmem, size = 0x12000, scoped, tag = 'internal scratch']
  %s0 = inlined_call_operand.vmem [shape: bf16[1,4,132], index: 0, kind: input, shape index: {}]
  %s1 = inlined_call_operand.vmem [shape: bf16[3,16,4], index: 1, kind: input, shape index: {}]
  %s2 = inlined_call_operand.vmem [shape: f32[16,1], index: 2, kind: input, shape index: {}]
  %s3 = inlined_call_operand.vmem [shape: bf16[3,64,16], index: 3, kind: input, shape index: {}]
  %s4 = inlined_call_operand.vmem [shape: f32[16,1], index: 4, kind: input, shape index: {}]
  %s5 = inlined_call_operand.hbm [shape: bf16[1,16,128], index: 5, kind: output, shape index: {}]
  %s6 = sld [smem:[#allocation0]]
  $region30: #{tpu_custom_call.1} parent=0
    _
  %s8 = ssub.s32 1, %s6
  %s9 = scalar_select 0, %s8, %s6
  $region1: #{tpu_custom_call.1} parent=0
    #allocation2 [shape = 'u8[4096]{0}', space=vmem, size = 0x1000, scoped, tag = 'output window, operand 0, single buffered']
    #allocation3 [shape = 's32[1]{0}', space=sflag, size = 0x4, scoped, tag = 'scoped memory for tpu_custom_call.1']
    %10 = vsyncpa [#allocation3], 0
    // Predicated region
    $region2: #{tpu_custom_call.1} parent=1 // pred_check
      _
    $region3: #{tpu_custom_call.1} parent=1 // pred_check_branch
      %12 = sbr.rel (0) target = $region5
    $region4: #{tpu_custom_call.1} parent=1 // pred_region
      _
    $region5: #{tpu_custom_call.1} parent=1 // pred_fallthru
      _
    // Predicated region
    $region6: #{tpu_custom_call.1} parent=1 // pred_check
      _
    $region7: #{tpu_custom_call.1} parent=1 // pred_check_branch
      %14 = sbr.rel (0) target = $region9
    $region8: #{tpu_custom_call.1} parent=1 // pred_region
      _
    $region9: #{tpu_custom_call.1} parent=1 // pred_fallthru
      _
    // Predicated region
    $region10: #{tpu_custom_call.1} parent=1 // pred_check
      _
    $region11: #{tpu_custom_call.1} parent=1 // pred_check_branch
      %16 = sbr.rel (0) target = $region13
    $region12: #{tpu_custom_call.1} parent=1 // pred_region
      _
    $region13: #{tpu_custom_call.1} parent=1 // pred_fallthru
      _
    // Predicated region
    $region14: #{tpu_custom_call.1} parent=1 // pred_check
      _
    $region15: #{tpu_custom_call.1} parent=1 // pred_check_branch
      %18 = sbr.rel (0) target = $region17
    $region16: #{tpu_custom_call.1} parent=1 // pred_region
      _
    $region17: #{tpu_custom_call.1} parent=1 // pred_fallthru
      _
    // Predicated region
    $region18: #{tpu_custom_call.1} parent=1 // pred_check
      _
    $region19: #{tpu_custom_call.1} parent=1 // pred_check_branch
      %20 = sbr.rel (0) target = $region21
    $region20: #{tpu_custom_call.1} parent=1 // pred_region
      _
    $region21: #{tpu_custom_call.1} parent=1 // pred_fallthru
      _
    %v22 = vld [vmem:[%s1] sm:$0xf]
    %v23 = vld [vmem:[%s1 + $0x4] sm:$0xf]
    %s24 = scalar_lea.vmem %s1, 8
    %v25 = vld [vmem:[%s24] sm:$0xf]
    %v26 = vld [vmem:[%s24 + $0x4] sm:$0xf]
    %s27 = scalar_lea.vmem %s1, 16
    %v28 = vld [vmem:[%s27] sm:$0xf]
    %v29 = vld [vmem:[%s27 + $0x4] sm:$0xf]
    %v30 = vld [vmem:[%s3] sm:$0xf]
    %v31 = vld [vmem:[%s3 + $0x4] sm:$0xf]
    %v32 = vld [vmem:[%s3 + $0x8] sm:$0xf]
    %v33 = vld [vmem:[%s3 + $0xc] sm:$0xf]
    %v34 = vld [vmem:[%s3 + $0x10] sm:$0xf]
    %v35 = vld [vmem:[%s3 + $0x14] sm:$0xf]
    %v36 = vld [vmem:[%s3 + $0x18] sm:$0xf]
    %v37 = vld [vmem:[%s3 + $0x1c] sm:$0xf]
    %s38 = scalar_lea.vmem %s3, 32
    %v39 = vld [vmem:[%s38] sm:$0xf]
    %v40 = vld [vmem:[%s38 + $0x4] sm:$0xf]
    %v41 = vld [vmem:[%s38 + $0x8] sm:$0xf]
    %v42 = vld [vmem:[%s38 + $0xc] sm:$0xf]
    %v43 = vld [vmem:[%s38 + $0x10] sm:$0xf]
    %v44 = vld [vmem:[%s38 + $0x14] sm:$0xf]
    %v45 = vld [vmem:[%s38 + $0x18] sm:$0xf]
    %v46 = vld [vmem:[%s38 + $0x1c] sm:$0xf]
    %s47 = scalar_lea.vmem %s3, 64
    %v48 = vld [vmem:[%s47] sm:$0xf]
    %v49 = vld [vmem:[%s47 + $0x4] sm:$0xf]
    %v50 = vld [vmem:[%s47 + $0x8] sm:$0xf]
    %v51 = vld [vmem:[%s47 + $0xc] sm:$0xf]
    %v52 = vld [vmem:[%s47 + $0x10] sm:$0xf]
    %v53 = vld [vmem:[%s47 + $0x14] sm:$0xf]
    %v54 = vld [vmem:[%s47 + $0x18] sm:$0xf]
    %v55 = vld [vmem:[%s47 + $0x1c] sm:$0xf]
    %v56 = vld [vmem:[%s2] sm:$0xff]
    %v57 = vld [vmem:[%s2 + $0x8] sm:$0xff]
    %v58 = vld [vmem:[%s4] sm:$0xff]
    %v59 = vld [vmem:[%s4 + $0x8] sm:$0xff]
    %v60 = vld [vmem:[%s0] sm:$0xf]
    %v63 = vunpack.c.l.b16 %v25
    %v64 = vunpack.c.l.b16 %v26
    %v65 = vpack.c.b16 %v64, %v63
    %v68 = vunpack.c.l.s4 1983009808
    %v69 = vunpack.c.0.s8 %v68
    %v70 = vlaneseq
    %v71 = vshrl.u32 %v70, 7
    %v72 = vsub.s32 %v69, %v71
    %v73 = vrot.slane %v60, %v72
    %v74 = vcombine.high %v73, %v73
    %75 = vrot.lane.b32.xlu0 %v73, 127
    %v76 = vpop.permute.xlu0 %75
    %77 = vrot.lane.b32.xlu0 %v74, 127
    %v78 = vpop.permute.xlu0 %77
    %vm79 = vcmask 1039360
    %v80 = vsel %vm79, %v76, %v78
    %vm81 = vcmask 31744
    %v83 = vsel %vm81, %v65, 0
    %vm85 = vcmask 1041408
    %v87 = vsel %vm85, %v80, 0
    %v90 = vsel %vm85, %v78, 0
    %92 = vmatprep.subr.bf16.mxu0 %v90
    %93 = vmatpush1.bf16.msra.mxu0 %v87
    %94 = vmatprep.subr.bf16.mxu0 0
    %95 = vmatpush1.bf16.msra.mxu0 0
    %96 = vmatprep.subr.bf16.mxu0 0
    %97 = vmatpush1.bf16.msra.mxu0 0
    %98 = vmatprep.subr.bf16.mxu0 0
    %99 = vmatpush1.bf16.msra.mxu0 0
    %100 = vmatprep.subr.bf16.mxu0 0
    %101 = vmatpush1.bf16.msra.mxu0 0
    %102 = vmatprep.subr.bf16.mxu0 0
    %103 = vmatpush1.bf16.msra.mxu0 0
    %104 = vmatprep.subr.bf16.mxu0 0
    %105 = vmatpush1.bf16.msra.mxu0 0
    %106 = vmatprep.subr.bf16.mxu0 0
    %107 = vmatpush1.bf16.msra.mxu0 0
    %108 = vmatprep.subr.bf16.mxu0 0
    %109 = vmatpush1.bf16.msra.mxu0 0
    %110 = vmatprep.subr.bf16.mxu0 0
    %111 = vmatpush1.bf16.msra.mxu0 0
    %112 = vmatprep.subr.bf16.mxu0 0
    %113 = vmatpush1.bf16.msra.mxu0 0
    %114 = vmatprep.subr.bf16.mxu0 0
    %115 = vmatpush1.bf16.msra.mxu0 0
    %116 = vmatprep.subr.bf16.mxu0 0
    %117 = vmatpush1.bf16.msra.mxu0 0
    %118 = vmatprep.subr.bf16.mxu0 0
    %119 = vmatpush1.bf16.msra.mxu0 0
    %120 = vmatprep.subr.bf16.mxu0 0
    %121 = vmatpush1.bf16.msra.mxu0 0
    %122 = vmatprep.subr.bf16.mxu0 0
    %123 = vmatpush1.bf16.msra.mxu0 0
    %124 = vmatprep.mubr.bf16.mxu0 0
    %125 = vmatmul.mubr.bf16.gmra.mrb[0].mxu0 %v83
    %v126 = vpop.f32.mrb[0].mxu0
    %v127 = vadd.f32 0.0, %v126
    %v128 = vpop.f32.mrb[0].mxu0
    %v129 = vadd.f32 0.0, %v128
    %v130 = vpop.f32.mrb[0].mxu0
    %v131 = vadd.f32 0.0, %v130
    %v132 = vpop.f32.mrb[0].mxu0
    %v133 = vadd.f32 0.0, %v132
    %134 = vdwg.mxu0
    %v137 = vunpack.c.l.b16 %v22
    %v138 = vunpack.c.l.b16 %v23
    %v139 = vpack.c.b16 %v138, %v137
    %v141 = vsel %vm81, %v139, 0
    %v144 = vsel %vm85, %v73, 0
    %v147 = vsel %vm85, %v74, 0
    %149 = vmatprep.subr.bf16.mxu0 %v147
    %150 = vmatpush1.bf16.msra.mxu0 %v144
    %151 = vmatprep.subr.bf16.mxu0 0
    %152 = vmatpush1.bf16.msra.mxu0 0
    %153 = vmatprep.subr.bf16.mxu0 0
    %154 = vmatpush1.bf16.msra.mxu0 0
    %155 = vmatprep.subr.bf16.mxu0 0
    %156 = vmatpush1.bf16.msra.mxu0 0
    %157 = vmatprep.subr.bf16.mxu0 0
    %158 = vmatpush1.bf16.msra.mxu0 0
    %159 = vmatprep.subr.bf16.mxu0 0
    %160 = vmatpush1.bf16.msra.mxu0 0
    %161 = vmatprep.subr.bf16.mxu0 0
    %162 = vmatpush1.bf16.msra.mxu0 0
    %163 = vmatprep.subr.bf16.mxu0 0
    %164 = vmatpush1.bf16.msra.mxu0 0
    %165 = vmatprep.subr.bf16.mxu0 0
    %166 = vmatpush1.bf16.msra.mxu0 0
    %167 = vmatprep.subr.bf16.mxu0 0
    %168 = vmatpush1.bf16.msra.mxu0 0
    %169 = vmatprep.subr.bf16.mxu0 0
    %170 = vmatpush1.bf16.msra.mxu0 0
    %171 = vmatprep.subr.bf16.mxu0 0
    %172 = vmatpush1.bf16.msra.mxu0 0
    %173 = vmatprep.subr.bf16.mxu0 0
    %174 = vmatpush1.bf16.msra.mxu0 0
    %175 = vmatprep.subr.bf16.mxu0 0
    %176 = vmatpush1.bf16.msra.mxu0 0
    %177 = vmatprep.subr.bf16.mxu0 0
    %178 = vmatpush1.bf16.msra.mxu0 0
    %179 = vmatprep.subr.bf16.mxu0 0
    %180 = vmatpush1.bf16.msra.mxu0 0
    %181 = vmatprep.mubr.bf16.mxu0 0
    %182 = vmatmul.mubr.bf16.gmra.mrb[0].mxu0 %v141
    %v183 = vpop.f32.mrb[0].mxu0
    %v184 = vadd.f32 %v127, %v183
    %v185 = vpop.f32.mrb[0].mxu0
    %v186 = vadd.f32 %v129, %v185
    %v187 = vpop.f32.mrb[0].mxu0
    %v188 = vadd.f32 %v131, %v187
    %v189 = vpop.f32.mrb[0].mxu0
    %v190 = vadd.f32 %v133, %v189
    %191 = vdwg.mxu0
    %v194 = vunpack.c.l.b16 %v28
    %v195 = vunpack.c.l.b16 %v29
    %v196 = vpack.c.b16 %v195, %v194
    %197 = vrot.lane.b32.xlu0 %v73, 126
    %v198 = vpop.permute.xlu0 %197
    %199 = vrot.lane.b32.xlu0 %v74, 126
    %v200 = vpop.permute.xlu0 %199
    %vm201 = vcmask 1031168
    %v202 = vsel %vm201, %v198, %v200
    %v204 = vsel %vm81, %v196, 0
    %v207 = vsel %vm85, %v202, 0
    %v210 = vsel %vm85, %v200, 0
    %212 = vmatprep.subr.bf16.mxu0 %v210
    %213 = vmatpush1.bf16.msra.mxu0 %v207
    %214 = vmatprep.subr.bf16.mxu0 0
    %215 = vmatpush1.bf16.msra.mxu0 0
    %216 = vmatprep.subr.bf16.mxu0 0
    %217 = vmatpush1.bf16.msra.mxu0 0
    %218 = vmatprep.subr.bf16.mxu0 0
    %219 = vmatpush1.bf16.msra.mxu0 0
    %220 = vmatprep.subr.bf16.mxu0 0
    %221 = vmatpush1.bf16.msra.mxu0 0
    %222 = vmatprep.subr.bf16.mxu0 0
    %223 = vmatpush1.bf16.msra.mxu0 0
    %224 = vmatprep.subr.bf16.mxu0 0
    %225 = vmatpush1.bf16.msra.mxu0 0
    %226 = vmatprep.subr.bf16.mxu0 0
    %227 = vmatpush1.bf16.msra.mxu0 0
    %228 = vmatprep.subr.bf16.mxu0 0
    %229 = vmatpush1.bf16.msra.mxu0 0
    %230 = vmatprep.subr.bf16.mxu0 0
    %231 = vmatpush1.bf16.msra.mxu0 0
    %232 = vmatprep.subr.bf16.mxu0 0
    %233 = vmatpush1.bf16.msra.mxu0 0
    %234 = vmatprep.subr.bf16.mxu0 0
    %235 = vmatpush1.bf16.msra.mxu0 0
    %236 = vmatprep.subr.bf16.mxu0 0
    %237 = vmatpush1.bf16.msra.mxu0 0
    %238 = vmatprep.subr.bf16.mxu0 0
    %239 = vmatpush1.bf16.msra.mxu0 0
    %240 = vmatprep.subr.bf16.mxu0 0
    %241 = vmatpush1.bf16.msra.mxu0 0
    %242 = vmatprep.subr.bf16.mxu0 0
    %243 = vmatpush1.bf16.msra.mxu0 0
    %244 = vmatprep.mubr.bf16.mxu0 0
    %245 = vmatmul.mubr.bf16.gmra.mrb[0].mxu0 %v204
    %v246 = vpop.f32.mrb[0].mxu0
    %v247 = vadd.f32 0.0, %v246
    %v248 = vpop.f32.mrb[0].mxu0
    %v249 = vadd.f32 0.0, %v248
    %v250 = vpop.f32.mrb[0].mxu0
    %v251 = vadd.f32 0.0, %v250
    %v252 = vpop.f32.mrb[0].mxu0
    %v253 = vadd.f32 0.0, %v252
    %254 = vdwg.mxu0
    %v255 = vadd.f32 %v184, %v247
    %v256 = vadd.f32 %v186, %v249
    %v257 = vadd.f32 %v188, %v251
    %v258 = vadd.f32 %v190, %v253
    %260 = vset.pattern.permute.xlu0 0
    %261 = vperm.xlu0 %260, %v56
    %v262 = vpop.permute.xlu0 %261
    %265 = vset.pattern.permute.xlu0 0
    %266 = vperm.xlu0 %265, %v57
    %v267 = vpop.permute.xlu0 %266
    %v269 = vadd.f32 %v255, %v262
    %v270 = vadd.f32 %v256, %v262
    %v271 = vadd.f32 %v257, %v267
    %v272 = vadd.f32 %v258, %v267
    %v273 = vmax.f32 %v269, 0.0
    %v274 = vmax.f32 %v270, 0.0
    %v275 = vmax.f32 %v271, 0.0
    %v276 = vmax.f32 %v272, 0.0
    %v277 = vpack.c.bf16 %v275, %v273
    %v278 = vpack.c.bf16 %v276, %v274
    %v287 = vunpack.c.l.b16 %v39
    %v288 = vunpack.c.l.b16 %v40
    %v289 = vunpack.c.l.b16 %v41
    %v290 = vunpack.c.l.b16 %v42
    %v291 = vunpack.c.l.b16 %v43
    %v292 = vunpack.c.l.b16 %v44
    %v293 = vunpack.c.l.b16 %v45
    %v294 = vunpack.c.l.b16 %v46
    %v295 = vpack.c.b16 %v288, %v287
    %v296 = vpack.c.b16 %v290, %v289
    %v297 = vpack.c.b16 %v292, %v291
    %v298 = vpack.c.b16 %v294, %v293
    %301 = vrot.lane.b32.xlu0 %v277, 127
    %v302 = vpop.permute.xlu0 %301
    %303 = vrot.lane.b32.xlu0 %v278, 127
    %v304 = vpop.permute.xlu0 %303
    %v305 = vsel %vm79, %v302, %v304
    %vm307 = vcmask 130048
    %v309 = vsel %vm307, %v295, 0
    %v312 = vsel %vm307, %v296, 0
    %v315 = vsel %vm307, %v297, 0
    %v318 = vsel %vm307, %v298, 0
    %320 = vmatprep.subr.bf16.mxu0 0
    %321 = vmatpush1.bf16.msra.mxu0 %v305
    %322 = vmatprep.subr.bf16.mxu0 0
    %323 = vmatpush1.bf16.msra.mxu0 0
    %324 = vmatprep.subr.bf16.mxu0 0
    %325 = vmatpush1.bf16.msra.mxu0 0
    %326 = vmatprep.subr.bf16.mxu0 0
    %327 = vmatpush1.bf16.msra.mxu0 0
    %328 = vmatprep.subr.bf16.mxu0 0
    %329 = vmatpush1.bf16.msra.mxu0 0
    %330 = vmatprep.subr.bf16.mxu0 0
    %331 = vmatpush1.bf16.msra.mxu0 0
    %332 = vmatprep.subr.bf16.mxu0 0
    %333 = vmatpush1.bf16.msra.mxu0 0
    %334 = vmatprep.subr.bf16.mxu0 0
    %335 = vmatpush1.bf16.msra.mxu0 0
    %336 = vmatprep.subr.bf16.mxu0 0
    %337 = vmatpush1.bf16.msra.mxu0 0
    %338 = vmatprep.subr.bf16.mxu0 0
    %339 = vmatpush1.bf16.msra.mxu0 0
    %340 = vmatprep.subr.bf16.mxu0 0
    %341 = vmatpush1.bf16.msra.mxu0 0
    %342 = vmatprep.subr.bf16.mxu0 0
    %343 = vmatpush1.bf16.msra.mxu0 0
    %344 = vmatprep.subr.bf16.mxu0 0
    %345 = vmatpush1.bf16.msra.mxu0 0
    %346 = vmatprep.subr.bf16.mxu0 0
    %347 = vmatpush1.bf16.msra.mxu0 0
    %348 = vmatprep.subr.bf16.mxu0 0
    %349 = vmatpush1.bf16.msra.mxu0 0
    %350 = vmatprep.subr.bf16.mxu0 0
    %351 = vmatpush1.bf16.msra.mxu0 0
    %352 = vmatprep.mubr.bf16.mxu0 0
    %353 = vmatmul.mubr.bf16.gmra.mrb[0].mxu0 %v309
    %v354 = vpop.f32.mrb[0].mxu0
    %v355 = vadd.f32 0.0, %v354
    %v356 = vpop.f32.mrb[0].mxu0
    %v357 = vpop.f32.mrb[0].mxu0
    %v358 = vadd.f32 0.0, %v357
    %v359 = vpop.f32.mrb[0].mxu0
    %360 = vmatprep.mubr.bf16.mxu0 0
    %361 = vmatmul.mubr.bf16.gmra.mrb[0].mxu0 %v312
    %v362 = vpop.f32.mrb[0].mxu0
    %v363 = vadd.f32 0.0, %v362
    %v364 = vpop.f32.mrb[0].mxu0
    %v365 = vpop.f32.mrb[0].mxu0
    %v366 = vadd.f32 0.0, %v365
    %v367 = vpop.f32.mrb[0].mxu0
    %368 = vmatprep.mubr.bf16.mxu0 0
    %369 = vmatmul.mubr.bf16.gmra.mrb[0].mxu0 %v315
    %v370 = vpop.f32.mrb[0].mxu0
    %v371 = vadd.f32 0.0, %v370
    %v372 = vpop.f32.mrb[0].mxu0
    %v373 = vpop.f32.mrb[0].mxu0
    %v374 = vadd.f32 0.0, %v373
    %v375 = vpop.f32.mrb[0].mxu0
    %376 = vmatprep.mubr.bf16.mxu0 0
    %377 = vmatmul.mubr.bf16.gmra.mrb[0].mxu0 %v318
    %v378 = vpop.f32.mrb[0].mxu0
    %v379 = vadd.f32 0.0, %v378
    %v380 = vpop.f32.mrb[0].mxu0
    %v381 = vpop.f32.mrb[0].mxu0
    %v382 = vadd.f32 0.0, %v381
    %v383 = vpop.f32.mrb[0].mxu0
    %384 = vdwg.mxu0
    %v393 = vunpack.c.l.b16 %v30
    %v394 = vunpack.c.l.b16 %v31
    %v395 = vunpack.c.l.b16 %v32
    %v396 = vunpack.c.l.b16 %v33
    %v397 = vunpack.c.l.b16 %v34
    %v398 = vunpack.c.l.b16 %v35
    %v399 = vunpack.c.l.b16 %v36
    %v400 = vunpack.c.l.b16 %v37
    %v401 = vpack.c.b16 %v394, %v393
    %v402 = vpack.c.b16 %v396, %v395
    %v403 = vpack.c.b16 %v398, %v397
    %v404 = vpack.c.b16 %v400, %v399
    %v406 = vsel %vm307, %v401, 0
    %v409 = vsel %vm307, %v402, 0
    %v412 = vsel %vm307, %v403, 0
    %v415 = vsel %vm307, %v404, 0
    %417 = vmatprep.subr.bf16.mxu0 0
    %418 = vmatpush1.bf16.msra.mxu0 %v277
    %419 = vmatprep.subr.bf16.mxu0 0
    %420 = vmatpush1.bf16.msra.mxu0 0
    %421 = vmatprep.subr.bf16.mxu0 0
    %422 = vmatpush1.bf16.msra.mxu0 0
    %423 = vmatprep.subr.bf16.mxu0 0
    %424 = vmatpush1.bf16.msra.mxu0 0
    %425 = vmatprep.subr.bf16.mxu0 0
    %426 = vmatpush1.bf16.msra.mxu0 0
    %427 = vmatprep.subr.bf16.mxu0 0
    %428 = vmatpush1.bf16.msra.mxu0 0
    %429 = vmatprep.subr.bf16.mxu0 0
    %430 = vmatpush1.bf16.msra.mxu0 0
    %431 = vmatprep.subr.bf16.mxu0 0
    %432 = vmatpush1.bf16.msra.mxu0 0
    %433 = vmatprep.subr.bf16.mxu0 0
    %434 = vmatpush1.bf16.msra.mxu0 0
    %435 = vmatprep.subr.bf16.mxu0 0
    %436 = vmatpush1.bf16.msra.mxu0 0
    %437 = vmatprep.subr.bf16.mxu0 0
    %438 = vmatpush1.bf16.msra.mxu0 0
    %439 = vmatprep.subr.bf16.mxu0 0
    %440 = vmatpush1.bf16.msra.mxu0 0
    %441 = vmatprep.subr.bf16.mxu0 0
    %442 = vmatpush1.bf16.msra.mxu0 0
    %443 = vmatprep.subr.bf16.mxu0 0
    %444 = vmatpush1.bf16.msra.mxu0 0
    %445 = vmatprep.subr.bf16.mxu0 0
    %446 = vmatpush1.bf16.msra.mxu0 0
    %447 = vmatprep.subr.bf16.mxu0 0
    %448 = vmatpush1.bf16.msra.mxu0 0
    %449 = vmatprep.mubr.bf16.mxu0 0
    %450 = vmatmul.mubr.bf16.gmra.mrb[0].mxu0 %v406
    %v451 = vpop.f32.mrb[0].mxu0
    %v452 = vadd.f32 %v355, %v451
    %v453 = vpop.f32.mrb[0].mxu0
    %v454 = vpop.f32.mrb[0].mxu0
    %v455 = vadd.f32 %v358, %v454
    %v456 = vpop.f32.mrb[0].mxu0
    %457 = vmatprep.mubr.bf16.mxu0 0
    %458 = vmatmul.mubr.bf16.gmra.mrb[0].mxu0 %v409
    %v459 = vpop.f32.mrb[0].mxu0
    %v460 = vadd.f32 %v363, %v459
    %v461 = vpop.f32.mrb[0].mxu0
    %v462 = vpop.f32.mrb[0].mxu0
    %v463 = vadd.f32 %v366, %v462
    %v464 = vpop.f32.mrb[0].mxu0
    %465 = vmatprep.mubr.bf16.mxu0 0
    %466 = vmatmul.mubr.bf16.gmra.mrb[0].mxu0 %v412
    %v467 = vpop.f32.mrb[0].mxu0
    %v468 = vadd.f32 %v371, %v467
    %v469 = vpop.f32.mrb[0].mxu0
    %v470 = vpop.f32.mrb[0].mxu0
    %v471 = vadd.f32 %v374, %v470
    %v472 = vpop.f32.mrb[0].mxu0
    %473 = vmatprep.mubr.bf16.mxu0 0
    %474 = vmatmul.mubr.bf16.gmra.mrb[0].mxu0 %v415
    %v475 = vpop.f32.mrb[0].mxu0
    %v476 = vadd.f32 %v379, %v475
    %v477 = vpop.f32.mrb[0].mxu0
    %v478 = vpop.f32.mrb[0].mxu0
    %v479 = vadd.f32 %v382, %v478
    %v480 = vpop.f32.mrb[0].mxu0
    %481 = vdwg.mxu0
    %v490 = vunpack.c.l.b16 %v48
    %v491 = vunpack.c.l.b16 %v49
    %v492 = vunpack.c.l.b16 %v50
    %v493 = vunpack.c.l.b16 %v51
    %v494 = vunpack.c.l.b16 %v52
    %v495 = vunpack.c.l.b16 %v53
    %v496 = vunpack.c.l.b16 %v54
    %v497 = vunpack.c.l.b16 %v55
    %v498 = vpack.c.b16 %v491, %v490
    %v499 = vpack.c.b16 %v493, %v492
    %v500 = vpack.c.b16 %v495, %v494
    %v501 = vpack.c.b16 %v497, %v496
    %502 = vrot.lane.b32.xlu0 %v277, 126
    %v503 = vpop.permute.xlu0 %502
    %504 = vrot.lane.b32.xlu0 %v278, 126
    %v505 = vpop.permute.xlu0 %504
    %v506 = vsel %vm201, %v503, %v505
    %v509 = vsel %vm307, %v498, 0
    %v512 = vsel %vm307, %v499, 0
    %v515 = vsel %vm307, %v500, 0
    %v518 = vsel %vm307, %v501, 0
    %520 = vmatprep.subr.bf16.mxu0 0
    %521 = vmatpush1.bf16.msra.mxu0 %v506
    %522 = vmatprep.subr.bf16.mxu0 0
    %523 = vmatpush1.bf16.msra.mxu0 0
    %524 = vmatprep.subr.bf16.mxu0 0
    %525 = vmatpush1.bf16.msra.mxu0 0
    %526 = vmatprep.subr.bf16.mxu0 0
    %527 = vmatpush1.bf16.msra.mxu0 0
    %528 = vmatprep.subr.bf16.mxu0 0
    %529 = vmatpush1.bf16.msra.mxu0 0
    %530 = vmatprep.subr.bf16.mxu0 0
    %531 = vmatpush1.bf16.msra.mxu0 0
    %532 = vmatprep.subr.bf16.mxu0 0
    %533 = vmatpush1.bf16.msra.mxu0 0
    %534 = vmatprep.subr.bf16.mxu0 0
    %535 = vmatpush1.bf16.msra.mxu0 0
    %536 = vmatprep.subr.bf16.mxu0 0
    %537 = vmatpush1.bf16.msra.mxu0 0
    %538 = vmatprep.subr.bf16.mxu0 0
    %539 = vmatpush1.bf16.msra.mxu0 0
    %540 = vmatprep.subr.bf16.mxu0 0
    %541 = vmatpush1.bf16.msra.mxu0 0
    %542 = vmatprep.subr.bf16.mxu0 0
    %543 = vmatpush1.bf16.msra.mxu0 0
    %544 = vmatprep.subr.bf16.mxu0 0
    %545 = vmatpush1.bf16.msra.mxu0 0
    %546 = vmatprep.subr.bf16.mxu0 0
    %547 = vmatpush1.bf16.msra.mxu0 0
    %548 = vmatprep.subr.bf16.mxu0 0
    %549 = vmatpush1.bf16.msra.mxu0 0
    %550 = vmatprep.subr.bf16.mxu0 0
    %551 = vmatpush1.bf16.msra.mxu0 0
    %552 = vmatprep.mubr.bf16.mxu0 0
    %553 = vmatmul.mubr.bf16.gmra.mrb[0].mxu0 %v509
    %v554 = vpop.f32.mrb[0].mxu0
    %v555 = vadd.f32 0.0, %v554
    %v556 = vpop.f32.mrb[0].mxu0
    %v557 = vpop.f32.mrb[0].mxu0
    %v558 = vadd.f32 0.0, %v557
    %v559 = vpop.f32.mrb[0].mxu0
    %560 = vmatprep.mubr.bf16.mxu0 0
    %561 = vmatmul.mubr.bf16.gmra.mrb[0].mxu0 %v512
    %v562 = vpop.f32.mrb[0].mxu0
    %v563 = vadd.f32 0.0, %v562
    %v564 = vpop.f32.mrb[0].mxu0
    %v565 = vpop.f32.mrb[0].mxu0
    %v566 = vadd.f32 0.0, %v565
    %v567 = vpop.f32.mrb[0].mxu0
    %568 = vmatprep.mubr.bf16.mxu0 0
    %569 = vmatmul.mubr.bf16.gmra.mrb[0].mxu0 %v515
    %v570 = vpop.f32.mrb[0].mxu0
    %v571 = vadd.f32 0.0, %v570
    %v572 = vpop.f32.mrb[0].mxu0
    %v573 = vpop.f32.mrb[0].mxu0
    %v574 = vadd.f32 0.0, %v573
    %v575 = vpop.f32.mrb[0].mxu0
    %576 = vmatprep.mubr.bf16.mxu0 0
    %577 = vmatmul.mubr.bf16.gmra.mrb[0].mxu0 %v518
    %v578 = vpop.f32.mrb[0].mxu0
    %v579 = vadd.f32 0.0, %v578
    %v580 = vpop.f32.mrb[0].mxu0
    %v581 = vpop.f32.mrb[0].mxu0
    %v582 = vadd.f32 0.0, %v581
    %v583 = vpop.f32.mrb[0].mxu0
    %584 = vdwg.mxu0
    %v585 = vadd.f32 %v452, %v555
    %v586 = vadd.f32 %v455, %v558
    %v587 = vadd.f32 %v460, %v563
    %v588 = vadd.f32 %v463, %v566
    %v589 = vadd.f32 %v468, %v571
    %v590 = vadd.f32 %v471, %v574
    %v591 = vadd.f32 %v476, %v579
    %v592 = vadd.f32 %v479, %v582
    %v593 = vmax.f32 %v585, %v587
    %v594 = vmax.f32 %v586, %v588
    %v595 = vmax.f32 %v593, %v589
    %v596 = vmax.f32 %v594, %v590
    %v597 = vmax.f32 %v595, %v591
    %v598 = vmax.f32 %v596, %v592
    %600 = vset.pattern.permute.xlu0 0
    %601 = vperm.xlu0 %600, %v58
    %v602 = vpop.permute.xlu0 %601
    %605 = vset.pattern.permute.xlu0 0
    %606 = vperm.xlu0 %605, %v59
    %v607 = vpop.permute.xlu0 %606
    %v609 = vadd.f32 %v597, %v602
    %v610 = vadd.f32 %v598, %v607
    %v611 = vmax.f32 %v609, 0.0
    %v612 = vmax.f32 %v610, 0.0
    %v613 = vpack.c.bf16 %v612, %v611
    %v615 = vunpack.c.l.b16 %v613
    %v616 = vunpack.c.h.b16 %v613
    %v617 = vpack.c.b16 %v615, %v615
    %v618 = vpack.c.b16 %v616, %v616
    %621 = vst [vmem:[#allocation2] sm:$0xf] %v617
    %622 = vst [vmem:[#allocation2 + $0x4] sm:$0xf] %v618
    // Predicated region
    $region22: #{tpu_custom_call.1} parent=1 // pred_check
      _
    $region23: #{tpu_custom_call.1} parent=1 // pred_check_branch
      %624 = sbr.rel (0) target = $region25
    $region24: #{tpu_custom_call.1} parent=1 // pred_region
      %s626 = ssub.s32 128, 128
      %627 = vsyncadd [#allocation3], %s626
      %s628 = sshll.u32 [#allocation2], 4
      %s629 = int_to_ptr.vmem [resolvable:$true] %s628
      %634 = dma.vmem_to_hbm [thread:$0]  %s629, 128, %s5, [#allocation3], 64, 64, 4
    $region25: #{tpu_custom_call.1} parent=1 // pred_fallthru
      _
    // Predicated region
    $region26: #{tpu_custom_call.1} parent=1 // pred_check
      _
    $region27: #{tpu_custom_call.1} parent=1 // pred_check_branch
      %636 = sbr.rel (0) target = $region29
    $region28: #{tpu_custom_call.1} parent=1 // pred_region
      %637 = dma.done [#allocation3], 128
    $region29: #{tpu_custom_call.1} parent=1 // pred_fallthru
      _
    %638 = vsyncpa [#allocation3], 1

</llo_original>
